<compile_context>
chip_gen: v7x
topology: tpu7x:2x2x1
jax: 0.10.0
libtpu: 0.0.40
codegen_flags: <defaults>
</compile_context>

<pallas_src>
import functools

import jax
import jax.numpy as jnp
from jax import lax
from jax.experimental import pallas as pl
from jax.experimental.pallas import tpu as pltpu


def _pwce_kernel(logits_ref, labels_ref, cw_ref, *rest,
                 s_total, tile_s, needs_mask, has_pixw):
    """One (batch n, pixel-tile s) step.

    logits_ref: (C, T)  input dtype (cast to f32 in-kernel)
    labels_ref: (1, T)  i32
    cw_ref:     (C, 1)  f32
    pixw_ref:   (1, T)  f32   (only when has_pixw)
    out_ref:    (8, 128) f32  per-batch partial sum (only [0, 0] is non-zero)
    acc_ref:    (1, T)  f32   VMEM vector accumulator, resident across the s axis
    """
    if has_pixw:
        pixw_ref, out_ref, acc_ref = rest
    else:
        pixw_ref = None
        out_ref, acc_ref = rest

    s_idx = pl.program_id(1)

    @pl.when(s_idx == 0)
    def _init():
        acc_ref[...] = jnp.zeros_like(acc_ref)

    x = logits_ref[...].astype(jnp.float32)                     # (C, T)

    # Stable log-sum-exp over the class (sublane) axis.
    m = jnp.max(x, axis=0, keepdims=True)                       # (1, T)
    lse = jnp.log(jnp.sum(jnp.exp(x - m), axis=0, keepdims=True)) + m

    labels = labels_ref[...]                                    # (1, T) i32
    cw = cw_ref[...].astype(jnp.float32)                        # (C, 1)
    cid = lax.broadcasted_iota(jnp.int32, x.shape, 0)           # (C, T)

    # One-hot gather of cw[label] * (lse - x[label]) without materializing logp.
    nll = jnp.sum(jnp.where(cid == labels, cw * (lse - x), 0.0),
                  axis=0, keepdims=True)                        # (1, T)

    if has_pixw:
        nll = nll * pixw_ref[...].astype(jnp.float32)

    if needs_mask:
        col = lax.broadcasted_iota(jnp.int32, nll.shape, 1) + s_idx * tile_s
        nll = jnp.where(col < s_total, nll, 0.0)

    acc_ref[...] += nll

    @pl.when(s_idx == pl.num_programs(1) - 1)
    def _finalize():
        total = jnp.sum(acc_ref[...])
        r = lax.broadcasted_iota(jnp.int32, out_ref.shape, 0)
        c = lax.broadcasted_iota(jnp.int32, out_ref.shape, 1)
        out_ref[...] = jnp.where((r == 0) & (c == 0), total, 0.0)


def pixelwise_cross_entropy_loss(logits, target, class_weights=None, weights=None,
                                 tile_s=None, vmem_limit_bytes=None):
    """logits: (N, C, *spatial) float; target: (N, 1, *spatial) int labels.

    weights (optional): (N, 1, *spatial) per-pixel weights (defaults to ones,
    which are NOT materialized). Returns scalar f32 loss identical to
    PixelWiseCrossEntropyLoss.forward (class_weights given or None).
    """
    N, C = logits.shape[0], logits.shape[1]
    S = 1
    for d in logits.shape[2:]:
        S *= d
    P = N * S
    itemsize = jnp.dtype(logits.dtype).itemsize

    # Copy-free flatten of trailing contiguous spatial dims (no transpose, no pad).
    x = logits.reshape(N, C, S)
    labels = target.reshape(N, 1, S).astype(jnp.int32)

    has_pixw = weights is not None
    if has_pixw:
        pixw = weights.reshape(N, 1, S).astype(jnp.float32)

    if class_weights is None:
        cw = jnp.ones((C, 1), jnp.float32)
    else:
        cw = jnp.asarray(class_weights, jnp.float32).reshape(C, 1)

    # Lane-dense pixel tile: multiple of 128, ~1 MiB of logits per block (amortizes
    # per-grid-step overhead), capped so f32 intermediates stay well inside VMEM.
    if tile_s is None:
        tile_s = (1024 * 1024) // max(C * itemsize, 1)
        tile_s = max(128, min(65536, (tile_s // 128) * 128))
    s_padded = pl.cdiv(S, 128) * 128
    tile_s = min(tile_s, s_padded)
    n_s_tiles = pl.cdiv(S, tile_s)
    needs_mask = (n_s_tiles * tile_s) != S

    if vmem_limit_bytes is None:
        est = (2 * (C * tile_s * itemsize + 2 * tile_s * 4)   # double-buffered inputs
               + 6 * C * tile_s * 4                           # f32 intermediates
               + tile_s * 4 + 2 * 8 * 128 * 4)                # accumulator + output
        vmem_limit_bytes = int(min(max(2 * est, 16 * 2 ** 20), 40 * 2 ** 20))

    in_specs = [
        pl.BlockSpec((None, C, tile_s), lambda n, s: (n, 0, s)),
        pl.BlockSpec((None, 1, tile_s), lambda n, s: (n, 0, s)),
        pl.BlockSpec((C, 1), lambda n, s: (0, 0)),
    ]
    inputs = [x, labels, cw]
    if has_pixw:
        in_specs.append(pl.BlockSpec((None, 1, tile_s), lambda n, s: (n, 0, s)))
        inputs.append(pixw)

    kernel = functools.partial(
        _pwce_kernel, s_total=S, tile_s=tile_s,
        needs_mask=needs_mask, has_pixw=has_pixw)

    partials = pl.pallas_call(
        kernel,
        out_shape=jax.ShapeDtypeStruct((N, 8, 128), jnp.float32),
        grid_spec=pltpu.PrefetchScalarGridSpec(
            num_scalar_prefetch=0,
            grid=(N, n_s_tiles),
            in_specs=in_specs,
            out_specs=pl.BlockSpec((None, 8, 128), lambda n, s: (n, 0, 0)),
            scratch_shapes=[pltpu.VMEM((1, tile_s), jnp.float32)],
        ),
        compiler_params=pltpu.CompilerParams(
            dimension_semantics=("parallel", "arbitrary"),
            vmem_limit_bytes=vmem_limit_bytes),
    )(*inputs)

    # torch's result.mean() averages over ALL N*C*D*H*W elements.
    return jnp.sum(partials) / jnp.float32(P * C)


def _reference_loss(logits, target, class_weights=None, weights=None):
    """Pure-JAX reference mirroring the PyTorch forward (for validation)."""
    C = logits.shape[1]
    logp = jax.nn.log_softmax(logits.astype(jnp.float32), axis=1)
    onehot = jax.nn.one_hot(target[:, 0], C, axis=1, dtype=jnp.float32)
    if weights is None:
        w = jnp.ones_like(logp)
    else:
        w = jnp.broadcast_to(weights.astype(jnp.float32), logp.shape)
    if class_weights is None:
        cw = jnp.ones((1, C) + (1,) * (logits.ndim - 2), jnp.float32)
    else:
        cw = jnp.asarray(class_weights, jnp.float32).reshape(
            (1, C) + (1,) * (logits.ndim - 2))
    return jnp.mean(-cw * w * onehot * logp)


if __name__ == "__main__":
    key = jax.random.PRNGKey(0)

    # Case 1: class_weights given, no per-pixel weights, S a multiple of 128.
    N, C, D, H, W = 2, 4, 4, 8, 8
    k1, k2, k3, k4, k5 = jax.random.split(key, 5)
    logits = jax.random.normal(k1, (N, C, D, H, W), dtype=jnp.float32)
    target = jax.random.randint(k2, (N, 1, D, H, W), 0, C, dtype=jnp.int32)
    class_weights = [0.5, 1.0, 1.5, 2.0]

    loss = jax.block_until_ready(
        pixelwise_cross_entropy_loss(logits, target, class_weights=class_weights))
    ref = jax.block_until_ready(_reference_loss(logits, target, class_weights))
    assert jnp.allclose(loss, ref, rtol=1e-5, atol=1e-6), (loss, ref)

    # Case 2: ragged spatial size (tail-mask path) + per-pixel weights, no class_weights.
    N2, C2, D2, H2, W2 = 2, 4, 3, 5, 7
    logits2 = jax.random.normal(k3, (N2, C2, D2, H2, W2), dtype=jnp.float32)
    target2 = jax.random.randint(k4, (N2, 1, D2, H2, W2), 0, C2, dtype=jnp.int32)
    pixw2 = jax.random.uniform(k5, (N2, 1, D2, H2, W2), dtype=jnp.float32)

    loss2 = jax.block_until_ready(
        pixelwise_cross_entropy_loss(logits2, target2, weights=pixw2))
    ref2 = jax.block_until_ready(_reference_loss(logits2, target2, weights=pixw2))
    assert jnp.allclose(loss2, ref2, rtol=1e-5, atol=1e-6), (loss2, ref2)

    print("KERNEL_OK")
</pallas_src>

<mosaic_0001>
module attributes {stable_mosaic.version = 11 : i64} {
  func.func @_pwce_kernel(%arg0: i32, %arg1: i32, %arg2: memref<1x4x256xf32, #tpu.memory_space<vmem>>, %arg3: memref<1x1x256xi32, #tpu.memory_space<vmem>>, %arg4: memref<4x1xf32, #tpu.memory_space<vmem>>, %arg5: memref<1x8x128xf32, #tpu.memory_space<vmem>>, %arg6: memref<1x256xf32, #tpu.memory_space<vmem>>) attributes {dimension_semantics = [#tpu.dimension_semantics<parallel>, #tpu.dimension_semantics<arbitrary>], iteration_bounds = array<i64: 2, 1>, scalar_prefetch = 0 : i64, scratch_operands = 1 : i64, tpu.core_type = #tpu.core_type<tc>, window_params = [{transform_indices = @transform_0, window_bounds = array<i64: 1, 4, 256>}, {transform_indices = @transform_1, window_bounds = array<i64: 1, 1, 256>}, {pipeline_mode = #tpu.pipeline_mode<synchronous>, transform_indices = @transform_2, window_bounds = array<i64: 4, 1>}, {transform_indices = @transform_3, window_bounds = array<i64: 1, 8, 128>}]} {
    %c0_i32 = arith.constant 0 : i32
    %0 = arith.cmpi eq, %arg1, %c0_i32 : i32
    %1 = arith.extui %0 : i1 to i32
    %c0_i32_0 = arith.constant 0 : i32
    %2 = arith.cmpi ne, %1, %c0_i32_0 : i32
    scf.if %2 {
      %cst_17 = arith.constant 0.000000e+00 : f32
      %34 = vector.broadcast %cst_17 : f32 to vector<1x256xf32>
      %c0_18 = arith.constant 0 : index
      %c0_19 = arith.constant 0 : index
      %35 = vector.load %arg6[%c0_18, %c0_19] : memref<1x256xf32, #tpu.memory_space<vmem>>, vector<1x256xf32>
      tpu.vector_store %arg6[%c0_18, %c0_19], %34 {strides = array<i32>} : memref<1x256xf32, #tpu.memory_space<vmem>>, vector<1x256xf32>,
    } else {
    }
    %c0 = arith.constant 0 : index
    %c0_1 = arith.constant 0 : index
    %c0_2 = arith.constant 0 : index
    %3 = vector.load %arg2[%c0, %c0_1, %c0_2] : memref<1x4x256xf32, #tpu.memory_space<vmem>>, vector<1x4x256xf32>
    %4 = vector.shape_cast %3 : vector<1x4x256xf32> to vector<4x256xf32>
    %cst = arith.constant dense<0xFF800000> : vector<256xf32>
    %5 = vector.multi_reduction <maximumf>, %4, %cst [0] : vector<4x256xf32> to vector<256xf32>
    %6 = vector.shape_cast %5 : vector<256xf32> to vector<1x256xf32>
    %7 = vector.broadcast %6 : vector<1x256xf32> to vector<4x256xf32>
    %8 = arith.subf %4, %7 : vector<4x256xf32>
    %9 = math.exp %8 : vector<4x256xf32>
    %cst_3 = arith.constant dense<0.000000e+00> : vector<256xf32>
    %10 = vector.multi_reduction <add>, %9, %cst_3 [0] : vector<4x256xf32> to vector<256xf32>
    %11 = vector.shape_cast %10 : vector<256xf32> to vector<1x256xf32>
    %12 = math.log %11 : vector<1x256xf32>
    %13 = arith.addf %12, %6 : vector<1x256xf32>
    %c0_4 = arith.constant 0 : index
    %c0_5 = arith.constant 0 : index
    %c0_6 = arith.constant 0 : index
    %14 = vector.load %arg3[%c0_4, %c0_5, %c0_6] : memref<1x1x256xi32, #tpu.memory_space<vmem>>, vector<1x1x256xi32>
    %15 = vector.shape_cast %14 : vector<1x1x256xi32> to vector<1x256xi32>
    %c0_7 = arith.constant 0 : index
    %c0_8 = arith.constant 0 : index
    %16 = vector.load %arg4[%c0_7, %c0_8] : memref<4x1xf32, #tpu.memory_space<vmem>>, vector<4x1xf32>
    %17 = tpu.iota {dimensions = array<i32: 0>} : vector<4x256xi32>
    %18 = vector.broadcast %15 : vector<1x256xi32> to vector<4x256xi32>
    %19 = arith.cmpi eq, %17, %18 : vector<4x256xi32>
    %20 = vector.broadcast %13 : vector<1x256xf32> to vector<4x256xf32>
    %21 = arith.subf %20, %4 : vector<4x256xf32>
    %22 = vector.broadcast %16 : vector<4x1xf32> to vector<4x256xf32>
    %23 = arith.mulf %22, %21 : vector<4x256xf32>
    %cst_9 = arith.constant 0.000000e+00 : f32
    %24 = vector.broadcast %cst_9 : f32 to vector<4x256xf32>
    %25 = arith.select %19, %23, %24 : vector<4x256xi1>, vector<4x256xf32>
    %cst_10 = arith.constant dense<0.000000e+00> : vector<256xf32>
    %26 = vector.multi_reduction <add>, %25, %cst_10 [0] : vector<4x256xf32> to vector<256xf32>
    %27 = vector.shape_cast %26 : vector<256xf32> to vector<1x256xf32>
    %c0_11 = arith.constant 0 : index
    %c0_12 = arith.constant 0 : index
    %28 = vector.load %arg6[%c0_11, %c0_12] : memref<1x256xf32, #tpu.memory_space<vmem>>, vector<1x256xf32>
    %29 = arith.addf %28, %27 : vector<1x256xf32>
    %c0_13 = arith.constant 0 : index
    %c0_14 = arith.constant 0 : index
    %30 = vector.load %arg6[%c0_13, %c0_14] : memref<1x256xf32, #tpu.memory_space<vmem>>, vector<1x256xf32>
    tpu.vector_store %arg6[%c0_13, %c0_14], %29 {strides = array<i32>} : memref<1x256xf32, #tpu.memory_space<vmem>>, vector<1x256xf32>,
    %c0_i32_15 = arith.constant 0 : i32
    %31 = arith.cmpi eq, %arg1, %c0_i32_15 : i32
    %32 = arith.extui %31 : i1 to i32
    %c0_i32_16 = arith.constant 0 : i32
    %33 = arith.cmpi ne, %32, %c0_i32_16 : i32
    scf.if %33 {
      %c0_17 = arith.constant 0 : index
      %c0_18 = arith.constant 0 : index
      %34 = vector.load %arg6[%c0_17, %c0_18] : memref<1x256xf32, #tpu.memory_space<vmem>>, vector<1x256xf32>
      %35 = vector.shape_cast %34 : vector<1x256xf32> to vector<1x1x256xf32>
      %cst_19 = arith.constant dense<0.000000e+00> : vector<1xf32>
      %36 = vector.multi_reduction <add>, %35, %cst_19 [1, 2] : vector<1x1x256xf32> to vector<1xf32>
      %37 = vector.shape_cast %36 : vector<1xf32> to vector<1x1x1xf32>
      %38 = vector.extract %37[0, 0, 0] : f32 from vector<1x1x1xf32>
      %39 = tpu.iota {dimensions = array<i32: 0>} : vector<8x128xi32>
      %40 = tpu.iota {dimensions = array<i32: 1>} : vector<8x128xi32>
      %c0_i32_20 = arith.constant 0 : i32
      %41 = vector.broadcast %c0_i32_20 : i32 to vector<8x128xi32>
      %42 = arith.cmpi eq, %39, %41 : vector<8x128xi32>
      %c0_i32_21 = arith.constant 0 : i32
      %43 = vector.broadcast %c0_i32_21 : i32 to vector<8x128xi32>
      %44 = arith.cmpi eq, %40, %43 : vector<8x128xi32>
      %45 = arith.andi %42, %44 : vector<8x128xi1>
      %cst_22 = arith.constant 0.000000e+00 : f32
      %46 = vector.broadcast %38 : f32 to vector<8x128xf32>
      %47 = vector.broadcast %cst_22 : f32 to vector<8x128xf32>
      %48 = arith.select %45, %46, %47 : vector<8x128xi1>, vector<8x128xf32>
      %c0_23 = arith.constant 0 : index
      %c0_24 = arith.constant 0 : index
      %c0_25 = arith.constant 0 : index
      %49 = vector.load %arg5[%c0_23, %c0_24, %c0_25] : memref<1x8x128xf32, #tpu.memory_space<vmem>>, vector<1x8x128xf32>
      %50 = vector.shape_cast %49 : vector<1x8x128xf32> to vector<8x128xf32>
      %51 = vector.shape_cast %48 : vector<8x128xf32> to vector<1x8x128xf32>
      tpu.vector_store %arg5[%c0_23, %c0_24, %c0_25], %51 {strides = array<i32>} : memref<1x8x128xf32, #tpu.memory_space<vmem>>, vector<1x8x128xf32>,
    } else {
    }
    return
  }
  func.func @transform_0(%arg0: i32, %arg1: i32) -> (i32, i32, i32) {
    %c0_i32 = arith.constant 0 : i32
    %c0_i32_0 = arith.constant 0 : i32
    return %arg0, %c0_i32, %arg1 : i32, i32, i32
  }
  func.func @transform_1(%arg0: i32, %arg1: i32) -> (i32, i32, i32) {
    %c0_i32 = arith.constant 0 : i32
    %c0_i32_0 = arith.constant 0 : i32
    return %arg0, %c0_i32, %arg1 : i32, i32, i32
  }
  func.func @transform_2(%arg0: i32, %arg1: i32) -> (i32, i32) {
    %c0_i32 = arith.constant 0 : i32
    %c0_i32_0 = arith.constant 0 : i32
    %c0_i32_1 = arith.constant 0 : i32
    return %c0_i32, %c0_i32_0 : i32, i32
  }
  func.func @transform_3(%arg0: i32, %arg1: i32) -> (i32, i32, i32) {
    %c0_i32 = arith.constant 0 : i32
    %c0_i32_0 = arith.constant 0 : i32
    %c0_i32_1 = arith.constant 0 : i32
    return %arg0, %c0_i32, %c0_i32_0 : i32, i32, i32
  }
}

</mosaic_0001>

<llo_original>
// kernel: tpu_custom_call.1
$region0: #{tpu_custom_call.1}
  #allocation0 [shape = 'u32[]', space=smem, size = 0x4, offset = 0x4, fixed_abs, tag = 'smem constant byte address 0x4 - core index']
  #allocation1 [shape = 'u32[144,128]{1,0:T(1,128)}', space=vmem, size = 0x12000, scoped, tag = 'internal scratch']
  #allocation2 [shape = 'f32[1,256]{1,0:T(1,128)}', space=vmem, size = 0x400, scoped, tag = 'scratch operand']
  %s0 = inlined_call_operand.hbm [shape: f32[2,4,256], index: 0, kind: input, shape index: {}]
  %s1 = inlined_call_operand.vmem [shape: s32[2,1,256], index: 1, kind: input, shape index: {}]
  %s2 = inlined_call_operand.vmem [shape: f32[4,1], index: 2, kind: input, shape index: {}]
  %s3 = inlined_call_operand.hbm [shape: f32[2,8,128], index: 3, kind: output, shape index: {}]
  %s4 = sld [smem:[#allocation0]]
  $region57: #{tpu_custom_call.1} parent=0
    _
  %s6 = ssub.s32 1, %s4
  %s7 = scalar_select 0, %s6, %s4
  $region1: #{tpu_custom_call.1} parent=0
    #allocation3 [shape = 'u8[8192]{0}', space=vmem, size = 0x2000, scoped, tag = 'input window, operand 0']
    #allocation4 [shape = 's32[2]{0}', space=sflag, size = 0x8, scoped, tag = 'scoped memory for tpu_custom_call.1']
    #allocation5 [shape = 's32[2]{0}', space=sflag, size = 0x8, scoped, tag = 'scoped memory for tpu_custom_call.1']
    #allocation6 [shape = 'u8[8192]{0}', space=vmem, size = 0x2000, scoped, tag = 'output window, operand 0']
    %8 = vsyncpa [#allocation4], 0
    %s9 = scalar_lea.sflag [#allocation4], 1
    %10 = vsyncpa %s9, 0
    %11 = vsyncpa [#allocation5], 0
    %s12 = scalar_lea.sflag [#allocation5], 1
    %13 = vsyncpa %s12, 0
    loop: start=0, step=1, limit=4
    $region2: #{tpu_custom_call.1} parent=1 // loop_pre_header
      _
    $region3: #{tpu_custom_call.1} parent=1 // loop_header
      %s15 = sphi 0, %s19
      %p16 = scmp.ge.s32.totalorder %s15, 4
      %s22 = sphi 0, %s34
      %s23 = sphi 0, %s30
      %s24 = sphi 0, %s22
      %s25 = sphi 0, %s23
      %s26 = sphi 0, %s24
      %s27 = sphi 0, %s25
      %s39 = sphi 0, %s41
      %s42 = sphi 0, %s39
      %s43 = sphi 0, %s42
      %s59 = sphi 0, %s43
      %s67 = sphi 0, %s69
      %s70 = sphi 0, %s67
      %s71 = sphi 0, %s70
      %s87 = sphi 0, %s71
      %s91 = sphi 0, %s91
      %s93 = sphi 0, %s91
      %s94 = sphi 0, %s93
      %s108 = sphi 0, %s94
      %s114 = sphi 0, %s116
      %s117 = sphi 0, %s114
      %s118 = sphi 0, %s117
      %s134 = sphi 0, %s118
    $region4: #{tpu_custom_call.1} parent=1 // loop_header_branch
      %18 = sbr.rel (%p16) target = $region8
    $region5: #{tpu_custom_call.1} parent=1 // loop_body
      %s20 = ssub.s32 %s15, 1
      %s21 = ssub.s32 %s15, 2
      %s28 = sadd.s32 1, %s23
      %p29 = scmp.ge.s32.totalorder %s28, 1
      %s30 = scalar_select %p29, 0, %s28
      %s31 = sadd.s32 1, %s22
      %s32 = scalar_select %p29, %s31, %s22
      %p33 = scmp.ge.s32.totalorder %s32, 2
      %s34 = scalar_select %p33, 0, %s32
      %s35 = ssub.s32 %s22, %s34
      %s36 = ssub.s32 %s23, %s30
      %s37 = sor.u32 %s35, %s36
      %p38 = scmp.eq.s32.totalorder %s37, 0
      %s40 = sadd.s32 %s39, 1
      %s41 = scalar_select %p38, %s39, %s40
      %p44 = pneg %p38
      %p45 = scmp.eq.s32.totalorder %s15, 1
      %p46 = por %p44, %p45
      %p47 = scmp.ne.s32.totalorder %s39, %s42
      %p48 = scmp.eq.s32.totalorder %s15, 0
      %p49 = por %p47, %p48
      %p50 = scmp.ne.s32.totalorder %s39, %s42
      %p51 = scmp.eq.s32.totalorder %s20, 1
      %p52 = por %p50, %p51
      %p53 = scmp.ne.s32.totalorder %s42, %s43
      %p54 = scmp.eq.s32.totalorder %s20, 0
      %p55 = por %p53, %p54
      %p56 = scmp.ne.s32.totalorder %s42, %s43
      %p57 = scmp.eq.s32.totalorder %s21, 1
      %p58 = por %p56, %p57
      %p60 = scmp.ne.s32.totalorder %s43, %s59
      %p61 = scmp.eq.s32.totalorder %s21, 0
      %p62 = por %p60, %p61
      %s63 = ssub.s32 %s22, %s34
      %s64 = ssub.s32 %s23, %s30
      %s65 = sor.u32 %s63, %s64
      %p66 = scmp.eq.s32.totalorder %s65, 0
      %s68 = sadd.s32 %s67, 1
      %s69 = scalar_select %p66, %s67, %s68
      %p72 = pneg %p66
      %p73 = scmp.eq.s32.totalorder %s15, 1
      %p74 = por %p72, %p73
      %p75 = scmp.ne.s32.totalorder %s67, %s70
      %p76 = scmp.eq.s32.totalorder %s15, 0
      %p77 = por %p75, %p76
      %p78 = scmp.ne.s32.totalorder %s67, %s70
      %p79 = scmp.eq.s32.totalorder %s20, 1
      %p80 = por %p78, %p79
      %p81 = scmp.ne.s32.totalorder %s70, %s71
      %p82 = scmp.eq.s32.totalorder %s20, 0
      %p83 = por %p81, %p82
      %p84 = scmp.ne.s32.totalorder %s70, %s71
      %p85 = scmp.eq.s32.totalorder %s21, 1
      %p86 = por %p84, %p85
      %p88 = scmp.ne.s32.totalorder %s71, %s87
      %p89 = scmp.eq.s32.totalorder %s21, 0
      %p90 = por %p88, %p89
      %s92 = sadd.s32 %s91, 1
      %p95 = scmp.eq.s32.totalorder %s15, 1
      %p96 = scmp.ne.s32.totalorder %s91, %s93
      %p97 = scmp.eq.s32.totalorder %s15, 0
      %p98 = por %p96, %p97
      %p99 = scmp.ne.s32.totalorder %s91, %s93
      %p100 = scmp.eq.s32.totalorder %s20, 1
      %p101 = por %p99, %p100
      %p102 = scmp.ne.s32.totalorder %s93, %s94
      %p103 = scmp.eq.s32.totalorder %s20, 0
      %p104 = por %p102, %p103
      %p105 = scmp.ne.s32.totalorder %s93, %s94
      %p106 = scmp.eq.s32.totalorder %s21, 1
      %p107 = por %p105, %p106
      %p109 = scmp.ne.s32.totalorder %s94, %s108
      %p110 = scmp.eq.s32.totalorder %s21, 0
      %p111 = por %p109, %p110
      %s112 = ssub.s32 %s22, %s34
      %p113 = scmp.eq.s32.totalorder %s112, 0
      %s115 = sadd.s32 %s114, 1
      %s116 = scalar_select %p113, %s114, %s115
      %p119 = pneg %p113
      %p120 = scmp.eq.s32.totalorder %s15, 1
      %p121 = por %p119, %p120
      %p122 = scmp.ne.s32.totalorder %s114, %s117
      %p123 = scmp.eq.s32.totalorder %s15, 0
      %p124 = por %p122, %p123
      %p125 = scmp.ne.s32.totalorder %s114, %s117
      %p126 = scmp.eq.s32.totalorder %s20, 1
      %p127 = por %p125, %p126
      %p128 = scmp.ne.s32.totalorder %s117, %s118
      %p129 = scmp.eq.s32.totalorder %s20, 0
      %p130 = por %p128, %p129
      %p131 = scmp.ne.s32.totalorder %s117, %s118
      %p132 = scmp.eq.s32.totalorder %s21, 1
      %p133 = por %p131, %p132
      %p135 = scmp.ne.s32.totalorder %s118, %s134
      %p136 = scmp.eq.s32.totalorder %s21, 0
      %p137 = por %p135, %p136
      %p138 = scmp.le.s32.totalorder 1, %s15
      %p139 = scmp.lt.s32.totalorder %s15, 3
      %p140 = pnand %p138, %p139
      %p141 = pneg %p140
      // Predicated region
      $region9: #{tpu_custom_call.1} parent=5 // pred_check
        _
      $region10: #{tpu_custom_call.1} parent=5 // pred_check_branch
        %143 = sbr.rel (%p140) target = $region12
      $region11: #{tpu_custom_call.1} parent=5 // pred_region
        %s144 = ssub.s32 %s15, 1
        // Predicated region
        $region13: #{tpu_custom_call.1} parent=11 // pred_check
          %p145 = pneg %p104
        $region14: #{tpu_custom_call.1} parent=11 // pred_check_branch
          %147 = sbr.rel (%p145) target = $region16
        $region15: #{tpu_custom_call.1} parent=11 // pred_region
          _
        $region16: #{tpu_custom_call.1} parent=11 // pred_fallthru
          _
      $region12: #{tpu_custom_call.1} parent=5 // pred_fallthru
        _
      %p148 = scmp.lt.s32.totalorder %s15, 2
      // Predicated region
      $region17: #{tpu_custom_call.1} parent=5 // pred_check
        %p149 = pneg %p148
      $region18: #{tpu_custom_call.1} parent=5 // pred_check_branch
        %151 = sbr.rel (%p149) target = $region20
      $region19: #{tpu_custom_call.1} parent=5 // pred_region
        // Predicated region
        $region21: #{tpu_custom_call.1} parent=19 // pred_check
          %p152 = pneg %p49
        $region22: #{tpu_custom_call.1} parent=19 // pred_check_branch
          %154 = sbr.rel (%p152) target = $region24
        $region23: #{tpu_custom_call.1} parent=19 // pred_region
          %s155 = sand.u32 %s39, 1
          %s156 = scalar_lea.sflag [#allocation4], %s155
          %s157 = sand.u32 %s39, 1
          %s158 = smul.addr %s157, 8
          %s159 = scalar_lea.vmem [#allocation3], %s158
          %s160 = smul.u32 2, %s23
          %s162 = ssub.s32 128, 128
          %163 = vsyncadd %s156, %s162
          %s164 = smul.addr %s22, 2
          %s165 = sadd.s32 %s160, %s164
          %s166 = smul.addr %s165, 64
          %s167 = scalar_lea.hbm %s0, %s166
          %s169 = sshll.u32 %s159, 4
          %s170 = int_to_ptr.vmem [resolvable:$true] %s169
          %172 = dma.hbm_to_vmem [thread:$0]  %s167, 128, %s170, %s156
        $region24: #{tpu_custom_call.1} parent=19 // pred_fallthru
          _
        // Predicated region
        $region25: #{tpu_custom_call.1} parent=19 // pred_check
          %p173 = pneg %p77
        $region26: #{tpu_custom_call.1} parent=19 // pred_check_branch
          %175 = sbr.rel (%p173) target = $region28
        $region27: #{tpu_custom_call.1} parent=19 // pred_region
          %s176 = smul.u32 2, %s23
          %p177 = scmp.lt.s32.totalorder %s22, 1
          %s178 = scalar_select %p177, %s22, 1
          %p179 = scmp.lt.s32.totalorder %s176, 1
          %s180 = scalar_select %p179, %s176, 1
          %s181 = smul.addr %s178, 2
          %s182 = sadd.s32 %s180, %s181
          %s183 = scalar_lea.vmem %s1, %s182
          %s184 = smul.u32 2, %s23
        $region28: #{tpu_custom_call.1} parent=19 // pred_fallthru
          _
      $region20: #{tpu_custom_call.1} parent=5 // pred_fallthru
        _
      %p185 = scmp.le.s32.totalorder 1, %s15
      %p186 = scmp.lt.s32.totalorder %s15, 3
      %p187 = pnand %p185, %p186
      %p188 = pneg %p187
      // Predicated region
      $region29: #{tpu_custom_call.1} parent=5 // pred_check
        _
      $region30: #{tpu_custom_call.1} parent=5 // pred_check_branch
        %190 = sbr.rel (%p187) target = $region32
      $region31: #{tpu_custom_call.1} parent=5 // pred_region
        %s191 = ssub.s32 %s15, 1
        %s192 = sand.u32 %s42, 1
        %s193 = scalar_lea.sflag [#allocation4], %s192
        %s194 = sand.u32 %s42, 1
        %s195 = smul.addr %s194, 8
        %s196 = scalar_lea.vmem [#allocation3], %s195
        // Predicated region
        $region33: #{tpu_custom_call.1} parent=31 // pred_check
          %p197 = pneg %p55
        $region34: #{tpu_custom_call.1} parent=31 // pred_check_branch
          %199 = sbr.rel (%p197) target = $region36
        $region35: #{tpu_custom_call.1} parent=31 // pred_region
          %200 = dma.done %s193, 128
        $region36: #{tpu_custom_call.1} parent=31 // pred_fallthru
          _
        %s201 = sand.u32 %s42, 1
        %s202 = scalar_lea.sflag [#allocation4], %s201
        %s203 = sand.u32 %s42, 1
        %s204 = smul.addr %s203, 8
        %s205 = scalar_lea.vmem [#allocation3], %s204
        %p206 = pneg %p55
        %p207 = pneg %p52
        %s208 = smul.u32 2, %s25
        %p209 = scmp.lt.s32.totalorder %s24, 1
        %s210 = scalar_select %p209, %s24, 1
        %p211 = scmp.lt.s32.totalorder %s208, 1
        %s212 = scalar_select %p211, %s208, 1
        %s213 = smul.addr %s210, 2
        %s214 = sadd.s32 %s212, %s213
        %s215 = scalar_lea.vmem %s1, %s214
        %p216 = pneg %p83
        %p217 = pneg %p80
        %p218 = pneg %p104
        %p219 = pneg %p101
        %p220 = pneg %p130
        %p221 = pneg %p127
        %s222 = sand.u32 %s117, 1
        %s223 = scalar_lea.sflag [#allocation5], %s222
        %s224 = sand.u32 %s117, 1
        %s225 = smul.addr %s224, 8
        %s226 = scalar_lea.vmem [#allocation6], %s225
        %s227 = smul.u32 2, %s25
        %s228 = smul.u32 2, %s25
        %p229 = scmp.lt.s32.totalorder %s24, 1
        %s230 = scalar_select %p229, %s24, 1
        %p231 = scmp.lt.s32.totalorder %s228, 1
        %s232 = scalar_select %p231, %s228, 1
        %s233 = smul.addr %s230, 2
        %s234 = sadd.s32 %s232, %s233
        %s235 = scalar_lea.vmem %s1, %s234
        %s236 = smul.u32 2, %s25
        %p237 = scmp.eq.s32.totalorder %s25, 0
        // Predicated region
        $region37: #{tpu_custom_call.1} parent=31 // pred_check
          %p238 = pneg %p237
        $region38: #{tpu_custom_call.1} parent=31 // pred_check_branch
          %240 = sbr.rel (%p238) target = $region40
        $region39: #{tpu_custom_call.1} parent=31 // pred_region
          %v241 = vlaneseq
          %vm242 = vcmp.ge.s32.totalorder %v241, 0
          %vm243 = vcmp.lt.s32.totalorder %v241, 256
          %vm244 = vmand %vm242, %vm243
          %245 = vst.msk [vmem:[#allocation2] sm:$0x3] %vm244, 0.0
        $region40: #{tpu_custom_call.1} parent=31 // pred_fallthru
          _
        %v246 = vld [vmem:[%s196] sm:$0xff]
        %v248 = vcombine.high %v246, %v246
        %vm250 = vcmask 1043456
        %v251 = vsel %vm250, %v246, -inf
        %v252 = vrot.slane %v251, 4
        %v253 = vmax.f32 %v251, %v252
        %v254 = vrot.slane %v253, 2
        %v255 = vmax.f32 %v253, %v254
        %v256 = vrot.slane %v255, 1
        %v257 = vmax.f32 %v255, %v256
        %v258 = vsel %vm250, %v248, -inf
        %v259 = vrot.slane %v258, 4
        %v260 = vmax.f32 %v258, %v259
        %v261 = vrot.slane %v260, 2
        %v262 = vmax.f32 %v260, %v261
        %v263 = vrot.slane %v262, 1
        %v264 = vmax.f32 %v262, %v263
        %v267 = vcombine.low %v257, %v264
        %v269 = vsub.f32 %v246, %v267
        %v270 = vmul.f32 %v269, 1.442695
        %v271 = vpow.pop %v270
        %v273 = vcombine.high %v271, %v271
        %v275 = vsel %vm250, %v271, 0.0
        %v276 = vrot.slane %v275, 4
        %v277 = vadd.f32 %v275, %v276
        %v278 = vrot.slane %v277, 2
        %v279 = vadd.f32 %v277, %v278
        %v280 = vrot.slane %v279, 1
        %v281 = vadd.f32 %v279, %v280
        %v282 = vsel %vm250, %v273, 0.0
        %v283 = vrot.slane %v282, 4
        %v284 = vadd.f32 %v282, %v283
        %v285 = vrot.slane %v284, 2
        %v286 = vadd.f32 %v284, %v285
        %v287 = vrot.slane %v286, 1
        %v288 = vadd.f32 %v286, %v287
        %v289 = vlog2.pop %v281
        %v290 = vmul.f32 %v289, 0.6931472
        %v291 = vlog2.pop %v288
        %v292 = vmul.f32 %v291, 0.6931472
        %v293 = vadd.f32 %v290, %v257
        %v294 = vadd.f32 %v292, %v264
        %v295 = vld [vmem:[%s235] sm:$0x3]
        %v296 = vld [vmem:[%s2] sm:$0xf]
        %v297 = vlaneseq
        %v298 = vshrl.u32 %v297, 7
        %v299 = vlaneseq
        %v300 = vshrl.u32 %v299, 7
        %v301 = vsub.s32 0, %v300
        %v302 = vrot.slane %v295, %v301
        %v303 = vlaneseq
        %v304 = vshrl.u32 %v303, 7
        %v305 = vsub.s32 1, %v304
        %v306 = vrot.slane %v295, %v305
        %vm307 = vcmp.eq.s32.totalorder %v298, %v302
        %vm308 = vcmp.eq.s32.totalorder %v298, %v306
        %v309 = vsub.f32 %v293, %v246
        %v310 = vsub.f32 %v294, %v248
        %312 = vset.pattern.permute.xlu0 0
        %313 = vperm.xlu0 %312, %v296
        %v314 = vpop.permute.xlu0 %313
        %v316 = vmul.f32 %v314, %v309
        %v317 = vmul.f32 %v314, %v310
        %v318 = vsel %vm307, %v316, 0.0
        %v319 = vsel %vm308, %v317, 0.0
        %v320 = vsel %vm250, %v318, 0.0
        %v321 = vrot.slane %v320, 4
        %v322 = vadd.f32 %v320, %v321
        %v323 = vrot.slane %v322, 2
        %v324 = vadd.f32 %v322, %v323
        %v325 = vrot.slane %v324, 1
        %v326 = vadd.f32 %v324, %v325
        %v327 = vsel %vm250, %v319, 0.0
        %v328 = vrot.slane %v327, 4
        %v329 = vadd.f32 %v327, %v328
        %v330 = vrot.slane %v329, 2
        %v331 = vadd.f32 %v329, %v330
        %v332 = vrot.slane %v331, 1
        %v333 = vadd.f32 %v331, %v332
        %v334 = vld [vmem:[#allocation2] sm:$0x3]
        %v337 = vcombine.low %v326, %v333
        %v339 = vunpack.c.l.s4 1966171168
        %v340 = vunpack.c.0.s8 %v339
        %v341 = vlaneseq
        %v342 = vshrl.u32 %v341, 7
        %v343 = vsub.s32 %v340, %v342
        %v344 = vrot.slane %v337, %v343
        %v346 = vunpack.c.l.s4 1966171168
        %v347 = vunpack.c.0.s8 %v346
        %v348 = vlaneseq
        %v349 = vshrl.u32 %v348, 7
        %v350 = vsub.s32 %v347, %v349
        %v351 = vrot.slane %v344, %v350
        %v353 = vadd.f32 %v334, %v351
        %v354 = vlaneseq
        %vm355 = vcmp.ge.s32.totalorder %v354, 0
        %vm356 = vcmp.lt.s32.totalorder %v354, 256
        %vm357 = vmand %vm355, %vm356
        %358 = vst.msk [vmem:[#allocation2] sm:$0x3] %vm357, %v353
        // Predicated region
        $region41: #{tpu_custom_call.1} parent=31 // pred_check
          %p359 = pneg %p237
        $region42: #{tpu_custom_call.1} parent=31 // pred_check_branch
          %361 = sbr.rel (%p359) target = $region44
        $region43: #{tpu_custom_call.1} parent=31 // pred_region
          %v362 = vld [vmem:[#allocation2] sm:$0x3]
          %v364 = vlaneseq
          %v365 = vshrl.u32 %v364, 7
          %v366 = vsub.s32 0, %v365
          %v367 = vrot.slane %v362, %v366
          %v368 = vlaneseq
          %v369 = vshrl.u32 %v368, 7
          %v370 = vsub.s32 1, %v369
          %v371 = vrot.slane %v362, %v370
          %vm374 = vcmask 1040384
          %v375 = vsel %vm374, %v367, 0.0
          %v376 = vsel %vm374, %v371, 0.0
          %v377 = vadd.f32 %v375, %v376
          %378 = vadd.xlane.f32.xlu0 %v377
          %v379 = vpop.xlane.xlu0 %378
          %v380 = vrot.slane %v379, 4
          %v381 = vadd.f32 %v379, %v380
          %v382 = vrot.slane %v381, 2
          %v383 = vadd.f32 %v381, %v382
          %v384 = vrot.slane %v383, 1
          %v385 = vadd.f32 %v383, %v384
          %s386 = vtos %v385
          %v387 = vlaneseq
          %v388 = vand.u32 %v387, 127
          %vm389 = vcmp.eq.s32.totalorder %v298, 0
          %vm390 = vcmp.eq.s32.totalorder %v388, 0
          %vm391 = vmand %vm389, %vm390
          %v392 = vstv %s386
          %v393 = vsel %vm391, %v392, 0.0
          %394 = vst [vmem:[%s226] sm:$0xff] %v393
        $region44: #{tpu_custom_call.1} parent=31 // pred_fallthru
          _
        %s395 = sand.u32 %s117, 1
        %s396 = scalar_lea.sflag [#allocation5], %s395
        %s397 = sand.u32 %s117, 1
        %s398 = smul.addr %s397, 8
        %s399 = scalar_lea.vmem [#allocation6], %s398
        // Predicated region
        $region45: #{tpu_custom_call.1} parent=31 // pred_check
          %p400 = pneg %p127
        $region46: #{tpu_custom_call.1} parent=31 // pred_check_branch
          %402 = sbr.rel (%p400) target = $region48
        $region47: #{tpu_custom_call.1} parent=31 // pred_region
          %s404 = ssub.s32 128, 128
          %405 = vsyncadd %s396, %s404
          %s406 = smul.addr %s24, 128
          %s407 = scalar_lea.hbm %s3, %s406
          %s409 = sshll.u32 %s399, 4
          %s410 = int_to_ptr.vmem [resolvable:$true] %s409
          %412 = dma.vmem_to_hbm [thread:$0]  %s410, 128, %s407, %s396
        $region48: #{tpu_custom_call.1} parent=31 // pred_fallthru
          _
      $region32: #{tpu_custom_call.1} parent=5 // pred_fallthru
        _
      %p413 = scmp.le.s32.totalorder 2, %s15
      // Predicated region
      $region49: #{tpu_custom_call.1} parent=5 // pred_check
        %p414 = pneg %p413
      $region50: #{tpu_custom_call.1} parent=5 // pred_check_branch
        %416 = sbr.rel (%p414) target = $region52
      $region51: #{tpu_custom_call.1} parent=5 // pred_region
        %s417 = ssub.s32 %s15, 2
        // Predicated region
        $region53: #{tpu_custom_call.1} parent=51 // pred_check
          %p418 = pneg %p133
        $region54: #{tpu_custom_call.1} parent=51 // pred_check_branch
          %420 = sbr.rel (%p418) target = $region56
        $region55: #{tpu_custom_call.1} parent=51 // pred_region
          %s421 = sand.u32 %s118, 1
          %s422 = scalar_lea.sflag [#allocation5], %s421
          %s423 = sand.u32 %s118, 1
          %s424 = smul.addr %s423, 8
          %s425 = scalar_lea.vmem [#allocation6], %s424
          %426 = dma.done %s422, 128
        $region56: #{tpu_custom_call.1} parent=51 // pred_fallthru
          _
      $region52: #{tpu_custom_call.1} parent=5 // pred_fallthru
        _
    $region6: #{tpu_custom_call.1} parent=1 // loop_footer
      %s19 = sadd.s32 1, %s15
    $region7: #{tpu_custom_call.1} parent=1 // loop_footer_branch
      %14 = sbr.rel target = $region3
    $region8: #{tpu_custom_call.1} parent=1 // loop_exit
      _
    %427 = vsyncpa [#allocation4], 1
    %s428 = scalar_lea.sflag [#allocation4], 1
    %429 = vsyncpa %s428, 1
    %430 = vsyncpa [#allocation5], 1
    %s431 = scalar_lea.sflag [#allocation5], 1
    %432 = vsyncpa %s431, 1

</llo_original>
